<compile_context>
chip_gen: v5e
topology: v5e:2x2
jax: 0.10.0
libtpu: 0.0.40
codegen_flags: <defaults>
</compile_context>

<pallas_src>
import functools

import jax
import jax.numpy as jnp
from jax.experimental import pallas as pl
from jax.experimental.pallas import tpu as pltpu

# Cody-Waite split of pi (sleef PI_A2f/B2f/C2f). _PI_A has a 15-bit mantissa, so k*_PI_A is
# exact for |k| <= 512 (covers |angle| up to ~1600; test angles are <= mult = 1000).
_PI_A = 3.1414794921875
_PI_B = 1.1315941810607910156e-04
_PI_C = 1.9841872589410058936e-09
_INV_PI = 0.31830988618379067


def _round_up(x, m):
    return ((x + m - 1) // m) * m


@functools.partial(jax.jit, static_argnames=("dim", "theta", "mult", "block_m"))
def sincos_embed(x, *, dim=512, theta=300.0, mult=1000.0, block_m=1024):
    """Pallas SinCosEmbed. x: scalar, (B,), or (B, N). Returns (..., dim) float32."""
    x = jnp.asarray(x, jnp.float32)
    if x.ndim == 0:
        x = x[None]
    if x.ndim > 2:
        raise ValueError("SinCosEmbed expects scalar, 1-D, or 2-D input")
    reshape_out = x.ndim == 2
    if reshape_out:
        b, n = x.shape
        t = x.reshape(b * n)
    else:
        t = x
    m = t.shape[0]

    if dim % 2 != 0 or dim < 4:
        raise ValueError("dim must be even and >= 4")
    half = dim // 2

    # Frequency table (mult NOT folded in -- see kernel).
    freq = jnp.exp(
        jnp.arange(half, dtype=jnp.float32)
        * (-jnp.log(jnp.float32(theta)) / jnp.float32(half - 1))
    ).reshape(1, half)

    # Row tile: multiple of 8 sublanes, capped at block_m, and chosen so the grid has at
    # least 2 steps whenever m > 8 (lets "parallel" semantics feed both v7x TensorCores).
    tm = min(block_m, max(8, _round_up(pl.cdiv(m, 2), 8)))
    grid_m = pl.cdiv(m, tm)

    # Inner slab height: largest of 32/16/8 dividing tm -- each slab's (chunk, half)
    # temporaries stay in vregs instead of becoming a tile-sized VMEM scratch.
    chunk = 32 if tm % 32 == 0 else (16 if tm % 16 == 0 else 8)
    n_chunks = tm // chunk

    def kernel(t_ref, freq_ref, o_ref):
        # t_ref:    (tm, 1)    timesteps for this tile
        # freq_ref: (1, half)  resident frequency table
        # o_ref:    (tm, dim)  [:, :half] = sin, [:, half:] = cos
        freqs = freq_ref[...]

        def body(c, carry):
            r0 = pl.multiple_of(c * chunk, chunk)
            rows = pl.ds(r0, chunk)
            ts = t_ref[rows, :] * mult                    # (chunk, 1), PyTorch-order mult
            ang = ts * freqs                              # (chunk, half)
            # Shared range reduction: ang = k*pi + r, r in [-pi/2, pi/2].
            k = jnp.floor(ang * _INV_PI + 0.5)
            r = ang - k * _PI_A
            r = r - k * _PI_B
            r = r - k * _PI_C
            r2 = r * r
            # 11-degree sin / 10-degree cos minimax polynomials on [-pi/2, pi/2].
            sin_r = ((((-2.3889859e-08 * r2 + 2.7525562e-06) * r2 - 1.9840874e-04) * r2
                      + 8.3333310e-03) * r2 - 1.6666667e-01) * r2 * r + r
            cos_r = ((((-2.6051615e-07 * r2 + 2.4760495e-05) * r2 - 1.3888378e-03) * r2
                      + 4.1666638e-02) * r2 - 0.5) * r2 + 1.0
            # sin(ang) = (-1)^k sin(r), cos(ang) = (-1)^k cos(r); parity via float path
            # (exact for |k| << 2^23, no int conversion needed).
            sign = 1.0 - 2.0 * (k - 2.0 * jnp.floor(k * 0.5))
            o_ref[rows, :half] = sign * sin_r
            o_ref[rows, half:] = sign * cos_r
            return carry

        jax.lax.fori_loop(0, n_chunks, body, 0)

    t_col = t.reshape(m, 1)

    # VMEM: double-buffered output tile + t tile (lane-padded to 128) + freq table
    # (sublane-padded to 8), plus headroom for slab temporaries / compiler scratch.
    vmem_bytes = 2 * (tm * dim + tm * 128 + 8 * half) * 4 + (4 << 20)

    out = pl.pallas_call(
        kernel,
        out_shape=jax.ShapeDtypeStruct((m, dim), jnp.float32),
        grid_spec=pltpu.PrefetchScalarGridSpec(
            num_scalar_prefetch=0,
            grid=(grid_m,),
            in_specs=[
                pl.BlockSpec((tm, 1), lambda i: (i, 0)),     # timestep rows for this tile
                pl.BlockSpec((1, half), lambda i: (0, 0)),   # freq table, resident
            ],
            out_specs=pl.BlockSpec((tm, dim), lambda i: (i, 0)),
        ),
        compiler_params=pltpu.CompilerParams(
            dimension_semantics=("parallel",),
            vmem_limit_bytes=vmem_bytes,
        ),
    )(t_col, freq)

    if reshape_out:
        out = out.reshape(b, n, dim)
    return out


def _reference(x, dim=512, theta=300.0, mult=1000.0):
    """Pure-JAX mirror of the PyTorch SinCosEmbed.forward (same op ordering)."""
    x = jnp.asarray(x, jnp.float32)
    if x.ndim == 0:
        x = x[None]
    reshape_out = x.ndim == 2
    if reshape_out:
        b, n = x.shape
        t = x.reshape(b * n)
    else:
        t = x
    t = t * jnp.float32(mult)
    half = dim // 2
    freq = jnp.exp(
        jnp.arange(half, dtype=jnp.float32)
        * (-jnp.log(jnp.float32(theta)) / jnp.float32(half - 1))
    )
    ang = t[:, None] * freq[None, :]
    emb = jnp.concatenate([jnp.sin(ang), jnp.cos(ang)], axis=-1)
    if reshape_out:
        emb = emb.reshape(b, n, -1)
    return emb


if __name__ == "__main__":
    B, N, DIM = 2, 8, 512

    # Diffusion-style timesteps in [0, 1): angles reach |x|*mult <= 1000.
    x2d = jax.random.uniform(jax.random.PRNGKey(0), (B, N), jnp.float32)
    out2d = jax.block_until_ready(sincos_embed(x2d, dim=DIM))
    ref2d = _reference(x2d, dim=DIM)
    assert out2d.shape == (B, N, DIM), out2d.shape
    err2d = float(jnp.max(jnp.abs(out2d - ref2d)))

    # Ragged 1-D case exercises the cdiv boundary block (13 % 8 != 0, no pad/slice).
    x1d = jax.random.uniform(jax.random.PRNGKey(1), (13,), jnp.float32)
    out1d = jax.block_until_ready(sincos_embed(x1d, dim=DIM))
    ref1d = _reference(x1d, dim=DIM)
    assert out1d.shape == (13, DIM), out1d.shape
    err1d = float(jnp.max(jnp.abs(out1d - ref1d)))

    # The in-kernel shared-reduction sin/cos agrees with XLA's jnp.sin/cos to ~1e-6 for
    # angles up to ~1e3 (k*_PI_A exact for k <= 512); 1e-3 is a wide margin.
    assert err2d < 1e-3, err2d
    assert err1d < 1e-3, err1d
    print("KERNEL_OK")
</pallas_src>

<mosaic_0001>
module attributes {stable_mosaic.version = 11 : i64} {
  func.func @kernel(%arg0: i32, %arg1: memref<8x1xf32, #tpu.memory_space<vmem>>, %arg2: memref<1x256xf32, #tpu.memory_space<vmem>>, %arg3: memref<8x512xf32, #tpu.memory_space<vmem>>) attributes {dimension_semantics = [#tpu.dimension_semantics<parallel>], iteration_bounds = array<i64: 2>, scalar_prefetch = 0 : i64, scratch_operands = 0 : i64, tpu.core_type = #tpu.core_type<tc>, window_params = [{transform_indices = @transform_0, window_bounds = array<i64: 8, 1>}, {pipeline_mode = #tpu.pipeline_mode<synchronous>, transform_indices = @transform_1, window_bounds = array<i64: 1, 256>}, {transform_indices = @transform_2, window_bounds = array<i64: 8, 512>}]} {
    %c0 = arith.constant 0 : index
    %c0_0 = arith.constant 0 : index
    %0 = vector.load %arg2[%c0, %c0_0] : memref<1x256xf32, #tpu.memory_space<vmem>>, vector<1x256xf32>
    %c0_i32 = arith.constant 0 : i32
    %c8_i32 = arith.constant 8 : i32
    %1 = arith.muli %c0_i32, %c8_i32 : i32
    %2 = tpu.assume_multiple %1, 8 : i32
    %3 = arith.index_cast %2 : i32 to index
    %c0_1 = arith.constant 0 : index
    %4 = vector.load %arg1[%3, %c0_1] : memref<8x1xf32, #tpu.memory_space<vmem>>, vector<8x1xf32>
    %cst = arith.constant 1.000000e+03 : f32
    %5 = vector.broadcast %cst : f32 to vector<8x1xf32>
    %6 = arith.mulf %4, %5 : vector<8x1xf32>
    %7 = vector.broadcast %6 : vector<8x1xf32> to vector<8x256xf32>
    %8 = vector.broadcast %0 : vector<1x256xf32> to vector<8x256xf32>
    %9 = arith.mulf %7, %8 : vector<8x256xf32>
    %cst_2 = arith.constant 0.318309873 : f32
    %10 = vector.broadcast %cst_2 : f32 to vector<8x256xf32>
    %11 = arith.mulf %9, %10 : vector<8x256xf32>
    %cst_3 = arith.constant 5.000000e-01 : f32
    %12 = vector.broadcast %cst_3 : f32 to vector<8x256xf32>
    %13 = arith.addf %11, %12 : vector<8x256xf32>
    %14 = math.floor %13 : vector<8x256xf32>
    %cst_4 = arith.constant 3.14147949 : f32
    %15 = vector.broadcast %cst_4 : f32 to vector<8x256xf32>
    %16 = arith.mulf %14, %15 : vector<8x256xf32>
    %17 = arith.subf %9, %16 : vector<8x256xf32>
    %cst_5 = arith.constant 1.13159418E-4 : f32
    %18 = vector.broadcast %cst_5 : f32 to vector<8x256xf32>
    %19 = arith.mulf %14, %18 : vector<8x256xf32>
    %20 = arith.subf %17, %19 : vector<8x256xf32>
    %cst_6 = arith.constant 1.98418726E-9 : f32
    %21 = vector.broadcast %cst_6 : f32 to vector<8x256xf32>
    %22 = arith.mulf %14, %21 : vector<8x256xf32>
    %23 = arith.subf %20, %22 : vector<8x256xf32>
    %24 = arith.mulf %23, %23 : vector<8x256xf32>
    %cst_7 = arith.constant -2.3889859E-8 : f32
    %25 = vector.broadcast %cst_7 : f32 to vector<8x256xf32>
    %26 = arith.mulf %25, %24 : vector<8x256xf32>
    %cst_8 = arith.constant 2.75255616E-6 : f32
    %27 = vector.broadcast %cst_8 : f32 to vector<8x256xf32>
    %28 = arith.addf %26, %27 : vector<8x256xf32>
    %29 = arith.mulf %28, %24 : vector<8x256xf32>
    %cst_9 = arith.constant 1.98408743E-4 : f32
    %30 = vector.broadcast %cst_9 : f32 to vector<8x256xf32>
    %31 = arith.subf %29, %30 : vector<8x256xf32>
    %32 = arith.mulf %31, %24 : vector<8x256xf32>
    %cst_10 = arith.constant 0.00833333097 : f32
    %33 = vector.broadcast %cst_10 : f32 to vector<8x256xf32>
    %34 = arith.addf %32, %33 : vector<8x256xf32>
    %35 = arith.mulf %34, %24 : vector<8x256xf32>
    %cst_11 = arith.constant 0.166666672 : f32
    %36 = vector.broadcast %cst_11 : f32 to vector<8x256xf32>
    %37 = arith.subf %35, %36 : vector<8x256xf32>
    %38 = arith.mulf %37, %24 : vector<8x256xf32>
    %39 = arith.mulf %38, %23 : vector<8x256xf32>
    %40 = arith.addf %39, %23 : vector<8x256xf32>
    %cst_12 = arith.constant -2.60516146E-7 : f32
    %41 = vector.broadcast %cst_12 : f32 to vector<8x256xf32>
    %42 = arith.mulf %41, %24 : vector<8x256xf32>
    %cst_13 = arith.constant 2.47604949E-5 : f32
    %43 = vector.broadcast %cst_13 : f32 to vector<8x256xf32>
    %44 = arith.addf %42, %43 : vector<8x256xf32>
    %45 = arith.mulf %44, %24 : vector<8x256xf32>
    %cst_14 = arith.constant 0.00138883782 : f32
    %46 = vector.broadcast %cst_14 : f32 to vector<8x256xf32>
    %47 = arith.subf %45, %46 : vector<8x256xf32>
    %48 = arith.mulf %47, %24 : vector<8x256xf32>
    %cst_15 = arith.constant 0.0416666381 : f32
    %49 = vector.broadcast %cst_15 : f32 to vector<8x256xf32>
    %50 = arith.addf %48, %49 : vector<8x256xf32>
    %51 = arith.mulf %50, %24 : vector<8x256xf32>
    %cst_16 = arith.constant 5.000000e-01 : f32
    %52 = vector.broadcast %cst_16 : f32 to vector<8x256xf32>
    %53 = arith.subf %51, %52 : vector<8x256xf32>
    %54 = arith.mulf %53, %24 : vector<8x256xf32>
    %cst_17 = arith.constant 1.000000e+00 : f32
    %55 = vector.broadcast %cst_17 : f32 to vector<8x256xf32>
    %56 = arith.addf %54, %55 : vector<8x256xf32>
    %cst_18 = arith.constant 5.000000e-01 : f32
    %57 = vector.broadcast %cst_18 : f32 to vector<8x256xf32>
    %58 = arith.mulf %14, %57 : vector<8x256xf32>
    %59 = math.floor %58 : vector<8x256xf32>
    %cst_19 = arith.constant 2.000000e+00 : f32
    %60 = vector.broadcast %cst_19 : f32 to vector<8x256xf32>
    %61 = arith.mulf %60, %59 : vector<8x256xf32>
    %62 = arith.subf %14, %61 : vector<8x256xf32>
    %cst_20 = arith.constant 2.000000e+00 : f32
    %63 = vector.broadcast %cst_20 : f32 to vector<8x256xf32>
    %64 = arith.mulf %63, %62 : vector<8x256xf32>
    %cst_21 = arith.constant 1.000000e+00 : f32
    %65 = vector.broadcast %cst_21 : f32 to vector<8x256xf32>
    %66 = arith.subf %65, %64 : vector<8x256xf32>
    %67 = arith.mulf %66, %40 : vector<8x256xf32>
    %68 = arith.index_cast %2 : i32 to index
    %c0_22 = arith.constant 0 : index
    %69 = vector.load %arg3[%68, %c0_22] : memref<8x512xf32, #tpu.memory_space<vmem>>, vector<8x256xf32>
    tpu.vector_store %arg3[%68, %c0_22], %67 {strides = array<i32>} : memref<8x512xf32, #tpu.memory_space<vmem>>, vector<8x256xf32>,
    %70 = arith.mulf %66, %56 : vector<8x256xf32>
    %71 = arith.index_cast %2 : i32 to index
    %c256 = arith.constant 256 : index
    %72 = vector.load %arg3[%71, %c256] : memref<8x512xf32, #tpu.memory_space<vmem>>, vector<8x256xf32>
    tpu.vector_store %arg3[%71, %c256], %70 {strides = array<i32>} : memref<8x512xf32, #tpu.memory_space<vmem>>, vector<8x256xf32>,
    %c1_i32 = arith.constant 1 : i32
    return
  }
  func.func @transform_0(%arg0: i32) -> (i32, i32) {
    %c0_i32 = arith.constant 0 : i32
    %c0_i32_0 = arith.constant 0 : i32
    return %arg0, %c0_i32 : i32, i32
  }
  func.func @transform_1(%arg0: i32) -> (i32, i32) {
    %c0_i32 = arith.constant 0 : i32
    %c0_i32_0 = arith.constant 0 : i32
    %c0_i32_1 = arith.constant 0 : i32
    return %c0_i32, %c0_i32_0 : i32, i32
  }
  func.func @transform_2(%arg0: i32) -> (i32, i32) {
    %c0_i32 = arith.constant 0 : i32
    %c0_i32_0 = arith.constant 0 : i32
    return %arg0, %c0_i32 : i32, i32
  }
}

</mosaic_0001>

<llo_original>
// kernel: sincos_embed.1
$region0: #{sincos_embed.1}
  #allocation0 [shape = 'u32[]', space=smem, size = 0x4, offset = 0x4, fixed_abs, tag = 'smem constant byte address 0x4 - core index']
  #allocation1 [shape = 'u32[72,128]{1,0:T(1,128)}', space=vmem, size = 0x9000, scoped, tag = 'internal scratch']
  %s0 = inlined_call_operand.vmem [shape: f32[16,1], index: 0, kind: input, shape index: {}]
  %s1 = inlined_call_operand.vmem [shape: f32[1,256], index: 1, kind: input, shape index: {}]
  %s2 = inlined_call_operand.hbm [shape: f32[16,512], index: 2, kind: output, shape index: {}]
  %s3 = sld [smem:[#allocation0]]
  $region41: #{sincos_embed.1} parent=0
    _
  %s5 = ssub.s32 1, %s3
  %s6 = scalar_select 0, %s5, %s3
  $region1: #{sincos_embed.1} parent=0
    #allocation2 [shape = 'u8[32768]{0}', space=vmem, size = 0x8000, scoped, tag = 'output window, operand 0']
    #allocation3 [shape = 's32[2]{0}', space=sflag, size = 0x8, scoped, tag = 'scoped memory for sincos_embed.1']
    %7 = vsyncpa [#allocation3], 0
    %s8 = scalar_lea.sflag [#allocation3], 1
    %9 = vsyncpa %s8, 0
    loop: start=0, step=1, limit=4
    $region2: #{sincos_embed.1} parent=1 // loop_pre_header
      _
    $region3: #{sincos_embed.1} parent=1 // loop_header
      %s11 = sphi 0, %s15
      %p12 = scmp.ge.s32.totalorder %s11, 4
      %s21 = sphi 0, %s23
      %s24 = sphi 0, %s21
      %s25 = sphi 0, %s24
      %s41 = sphi 0, %s25
      %s45 = sphi 0, %s45
      %s47 = sphi 0, %s45
      %s48 = sphi 0, %s47
      %s62 = sphi 0, %s48
      %s68 = sphi 0, %s70
      %s71 = sphi 0, %s68
      %s72 = sphi 0, %s71
      %s88 = sphi 0, %s72
    $region4: #{sincos_embed.1} parent=1 // loop_header_branch
      %14 = sbr.rel (%p12) target = $region8
    $region5: #{sincos_embed.1} parent=1 // loop_body
      %s16 = ssub.s32 %s11, 1
      %s17 = ssub.s32 %s11, 2
      %s18 = sadd.s32 %s11, 1
      %s19 = ssub.s32 %s11, %s18
      %p20 = scmp.eq.s32.totalorder %s19, 0
      %s22 = sadd.s32 %s21, 1
      %s23 = scalar_select %p20, %s21, %s22
      %p26 = pneg %p20
      %p27 = scmp.eq.s32.totalorder %s11, 1
      %p28 = por %p26, %p27
      %p29 = scmp.ne.s32.totalorder %s21, %s24
      %p30 = scmp.eq.s32.totalorder %s11, 0
      %p31 = por %p29, %p30
      %p32 = scmp.ne.s32.totalorder %s21, %s24
      %p33 = scmp.eq.s32.totalorder %s16, 1
      %p34 = por %p32, %p33
      %p35 = scmp.ne.s32.totalorder %s24, %s25
      %p36 = scmp.eq.s32.totalorder %s16, 0
      %p37 = por %p35, %p36
      %p38 = scmp.ne.s32.totalorder %s24, %s25
      %p39 = scmp.eq.s32.totalorder %s17, 1
      %p40 = por %p38, %p39
      %p42 = scmp.ne.s32.totalorder %s25, %s41
      %p43 = scmp.eq.s32.totalorder %s17, 0
      %p44 = por %p42, %p43
      %s46 = sadd.s32 %s45, 1
      %p49 = scmp.eq.s32.totalorder %s11, 1
      %p50 = scmp.ne.s32.totalorder %s45, %s47
      %p51 = scmp.eq.s32.totalorder %s11, 0
      %p52 = por %p50, %p51
      %p53 = scmp.ne.s32.totalorder %s45, %s47
      %p54 = scmp.eq.s32.totalorder %s16, 1
      %p55 = por %p53, %p54
      %p56 = scmp.ne.s32.totalorder %s47, %s48
      %p57 = scmp.eq.s32.totalorder %s16, 0
      %p58 = por %p56, %p57
      %p59 = scmp.ne.s32.totalorder %s47, %s48
      %p60 = scmp.eq.s32.totalorder %s17, 1
      %p61 = por %p59, %p60
      %p63 = scmp.ne.s32.totalorder %s48, %s62
      %p64 = scmp.eq.s32.totalorder %s17, 0
      %p65 = por %p63, %p64
      %s66 = ssub.s32 %s11, %s18
      %p67 = scmp.eq.s32.totalorder %s66, 0
      %s69 = sadd.s32 %s68, 1
      %s70 = scalar_select %p67, %s68, %s69
      %p73 = pneg %p67
      %p74 = scmp.eq.s32.totalorder %s11, 1
      %p75 = por %p73, %p74
      %p76 = scmp.ne.s32.totalorder %s68, %s71
      %p77 = scmp.eq.s32.totalorder %s11, 0
      %p78 = por %p76, %p77
      %p79 = scmp.ne.s32.totalorder %s68, %s71
      %p80 = scmp.eq.s32.totalorder %s16, 1
      %p81 = por %p79, %p80
      %p82 = scmp.ne.s32.totalorder %s71, %s72
      %p83 = scmp.eq.s32.totalorder %s16, 0
      %p84 = por %p82, %p83
      %p85 = scmp.ne.s32.totalorder %s71, %s72
      %p86 = scmp.eq.s32.totalorder %s17, 1
      %p87 = por %p85, %p86
      %p89 = scmp.ne.s32.totalorder %s72, %s88
      %p90 = scmp.eq.s32.totalorder %s17, 0
      %p91 = por %p89, %p90
      %p92 = scmp.le.s32.totalorder 1, %s11
      %p93 = scmp.lt.s32.totalorder %s11, 3
      %p94 = pnand %p92, %p93
      %p95 = pneg %p94
      // Predicated region
      $region9: #{sincos_embed.1} parent=5 // pred_check
        _
      $region10: #{sincos_embed.1} parent=5 // pred_check_branch
        %97 = sbr.rel (%p94) target = $region12
      $region11: #{sincos_embed.1} parent=5 // pred_region
        %s98 = ssub.s32 %s11, 1
        // Predicated region
        $region13: #{sincos_embed.1} parent=11 // pred_check
          %p99 = pneg %p58
        $region14: #{sincos_embed.1} parent=11 // pred_check_branch
          %101 = sbr.rel (%p99) target = $region16
        $region15: #{sincos_embed.1} parent=11 // pred_region
          _
        $region16: #{sincos_embed.1} parent=11 // pred_fallthru
          _
      $region12: #{sincos_embed.1} parent=5 // pred_fallthru
        _
      %p102 = scmp.lt.s32.totalorder %s11, 2
      // Predicated region
      $region17: #{sincos_embed.1} parent=5 // pred_check
        %p103 = pneg %p102
      $region18: #{sincos_embed.1} parent=5 // pred_check_branch
        %105 = sbr.rel (%p103) target = $region20
      $region19: #{sincos_embed.1} parent=5 // pred_region
        // Predicated region
        $region21: #{sincos_embed.1} parent=19 // pred_check
          %p106 = pneg %p31
        $region22: #{sincos_embed.1} parent=19 // pred_check_branch
          %108 = sbr.rel (%p106) target = $region24
        $region23: #{sincos_embed.1} parent=19 // pred_region
          %p109 = scmp.lt.s32.totalorder %s11, 1
          %s110 = scalar_select %p109, %s11, 1
          %s111 = smul.addr %s110, 8
          %s112 = scalar_lea.vmem %s0, %s111
        $region24: #{sincos_embed.1} parent=19 // pred_fallthru
          _
      $region20: #{sincos_embed.1} parent=5 // pred_fallthru
        _
      %p113 = scmp.le.s32.totalorder 1, %s11
      %p114 = scmp.lt.s32.totalorder %s11, 3
      %p115 = pnand %p113, %p114
      %p116 = pneg %p115
      // Predicated region
      $region25: #{sincos_embed.1} parent=5 // pred_check
        _
      $region26: #{sincos_embed.1} parent=5 // pred_check_branch
        %118 = sbr.rel (%p115) target = $region28
      $region27: #{sincos_embed.1} parent=5 // pred_region
        %s119 = ssub.s32 %s11, 1
        %p120 = scmp.lt.s32.totalorder %s16, 1
        %s121 = scalar_select %p120, %s16, 1
        %s122 = smul.addr %s121, 8
        %s123 = scalar_lea.vmem %s0, %s122
        %p124 = pneg %p37
        %p125 = pneg %p34
        %p126 = pneg %p58
        %p127 = pneg %p55
        %p128 = pneg %p84
        %p129 = pneg %p81
        %s130 = sand.u32 %s71, 1
        %s131 = scalar_lea.sflag [#allocation3], %s130
        %s132 = sand.u32 %s71, 1
        %s133 = smul.addr %s132, 32
        %s134 = scalar_lea.vmem [#allocation2], %s133
        %p135 = scmp.lt.s32.totalorder %s16, 1
        %s136 = scalar_select %p135, %s16, 1
        %s137 = smul.addr %s136, 8
        %s138 = scalar_lea.vmem %s0, %s137
        %v139 = vld [vmem:[%s1] sm:$0x3]
        %v140 = vld [vmem:[%s138] sm:$0xff]
        %v141 = vmul.f32 %v140, 1000.0
        %143 = vset.pattern.permute.xlu0 0
        %144 = vperm.xlu0 %143, %v141
        %v145 = vpop.permute.xlu0 %144
        %v148 = vperm.slane %v139, 0
        %v149 = vperm.slane %v139, 1
        %v152 = vmul.f32 %v145, %v148
        %v153 = vmul.f32 %v145, %v149
        %v154 = vmul.f32 %v152, 0.31830987
        %v155 = vmul.f32 %v153, 0.31830987
        %v156 = vadd.f32 %v154, 0.5
        %v157 = vadd.f32 %v155, 0.5
        %v158 = vfloor.f32 %v156
        %v159 = vfloor.f32 %v157
        %v160 = vmul.f32 %v158, 3.1414795
        %v161 = vmul.f32 %v159, 3.1414795
        %v162 = vsub.f32 %v152, %v160
        %v163 = vsub.f32 %v153, %v161
        %v164 = vmul.f32 %v158, 0.00011315942
        %v165 = vmul.f32 %v159, 0.00011315942
        %v166 = vsub.f32 %v162, %v164
        %v167 = vsub.f32 %v163, %v165
        %v168 = vmul.f32 %v158, 1.9841873e-09
        %v169 = vmul.f32 %v159, 1.9841873e-09
        %v170 = vsub.f32 %v166, %v168
        %v171 = vsub.f32 %v167, %v169
        %v172 = vmul.f32 %v170, %v170
        %v173 = vmul.f32 %v171, %v171
        %v174 = vmul.f32 %v172, -2.3889859e-08
        %v175 = vmul.f32 %v173, -2.3889859e-08
        %v176 = vadd.f32 %v174, 2.7525562e-06
        %v177 = vadd.f32 %v175, 2.7525562e-06
        %v178 = vmul.f32 %v176, %v172
        %v179 = vmul.f32 %v177, %v173
        %v180 = vsub.f32 %v178, 0.00019840874
        %v181 = vsub.f32 %v179, 0.00019840874
        %v182 = vmul.f32 %v180, %v172
        %v183 = vmul.f32 %v181, %v173
        %v184 = vadd.f32 %v182, 0.008333331
        %v185 = vadd.f32 %v183, 0.008333331
        %v186 = vmul.f32 %v184, %v172
        %v187 = vmul.f32 %v185, %v173
        %v188 = vsub.f32 %v186, 0.16666667
        %v189 = vsub.f32 %v187, 0.16666667
        %v190 = vmul.f32 %v188, %v172
        %v191 = vmul.f32 %v189, %v173
        %v192 = vmul.f32 %v190, %v170
        %v193 = vmul.f32 %v191, %v171
        %v194 = vadd.f32 %v192, %v170
        %v195 = vadd.f32 %v193, %v171
        %v196 = vmul.f32 %v172, -2.6051615e-07
        %v197 = vmul.f32 %v173, -2.6051615e-07
        %v198 = vadd.f32 %v196, 2.4760495e-05
        %v199 = vadd.f32 %v197, 2.4760495e-05
        %v200 = vmul.f32 %v198, %v172
        %v201 = vmul.f32 %v199, %v173
        %v202 = vsub.f32 %v200, 0.0013888378
        %v203 = vsub.f32 %v201, 0.0013888378
        %v204 = vmul.f32 %v202, %v172
        %v205 = vmul.f32 %v203, %v173
        %v206 = vadd.f32 %v204, 0.041666638
        %v207 = vadd.f32 %v205, 0.041666638
        %v208 = vmul.f32 %v206, %v172
        %v209 = vmul.f32 %v207, %v173
        %v210 = vsub.f32 %v208, 0.5
        %v211 = vsub.f32 %v209, 0.5
        %v212 = vmul.f32 %v210, %v172
        %v213 = vmul.f32 %v211, %v173
        %v214 = vadd.f32 %v212, 1.0
        %v215 = vadd.f32 %v213, 1.0
        %v216 = vmul.f32 %v158, 0.5
        %v217 = vmul.f32 %v159, 0.5
        %v218 = vfloor.f32 %v216
        %v219 = vfloor.f32 %v217
        %v220 = vmul.f32 %v218, 2.0
        %v221 = vmul.f32 %v219, 2.0
        %v222 = vsub.f32 %v158, %v220
        %v223 = vsub.f32 %v159, %v221
        %v224 = vmul.f32 %v222, 2.0
        %v225 = vmul.f32 %v223, 2.0
        %v226 = vsub.f32 1.0, %v224
        %v227 = vsub.f32 1.0, %v225
        %v228 = vmul.f32 %v226, %v194
        %v229 = vmul.f32 %v227, %v195
        %s230 = smul.u32 0, 4
        %s231 = smul.addr %s230, 8
        %s232 = scalar_lea.vmem %s134, %s231 [#allocation2]
        %233 = vst [vmem:[%s232] sm:$0xff] %v228
        %234 = vst [vmem:[%s232 + $0x8] sm:$0xff] %v229
        %v235 = vmul.f32 %v226, %v214
        %v236 = vmul.f32 %v227, %v215
        %237 = vst [vmem:[%s232 + $0x10] sm:$0xff] %v235
        %238 = vst [vmem:[%s232 + $0x18] sm:$0xff] %v236
        %s239 = sand.u32 %s71, 1
        %s240 = scalar_lea.sflag [#allocation3], %s239
        %s241 = sand.u32 %s71, 1
        %s242 = smul.addr %s241, 32
        %s243 = scalar_lea.vmem [#allocation2], %s242
        // Predicated region
        $region29: #{sincos_embed.1} parent=27 // pred_check
          %p244 = pneg %p81
        $region30: #{sincos_embed.1} parent=27 // pred_check_branch
          %246 = sbr.rel (%p244) target = $region32
        $region31: #{sincos_embed.1} parent=27 // pred_region
          %248 = vsyncadd %s240, 0
          %s249 = smul.addr %s16, 4
          %s250 = smul.addr %s249, 8
          %s251 = scalar_lea.hbm %s2, %s250
          %s253 = sshll.u32 %s243, 4
          %s254 = int_to_ptr.vmem [resolvable:$true] %s253
          %s255 = sshll.u32 %s251, 4
          %s256 = int_to_ptr.hbm [resolvable:$true] %s255
          %258 = dma.vmem_to_hbm [thread:$0]  %s254, 512, %s256, %s240
        $region32: #{sincos_embed.1} parent=27 // pred_fallthru
          _
      $region28: #{sincos_embed.1} parent=5 // pred_fallthru
        _
      %p259 = scmp.le.s32.totalorder 2, %s11
      // Predicated region
      $region33: #{sincos_embed.1} parent=5 // pred_check
        %p260 = pneg %p259
      $region34: #{sincos_embed.1} parent=5 // pred_check_branch
        %262 = sbr.rel (%p260) target = $region36
      $region35: #{sincos_embed.1} parent=5 // pred_region
        %s263 = ssub.s32 %s11, 2
        // Predicated region
        $region37: #{sincos_embed.1} parent=35 // pred_check
          %p264 = pneg %p87
        $region38: #{sincos_embed.1} parent=35 // pred_check_branch
          %266 = sbr.rel (%p264) target = $region40
        $region39: #{sincos_embed.1} parent=35 // pred_region
          %s267 = sand.u32 %s72, 1
          %s268 = scalar_lea.sflag [#allocation3], %s267
          %s269 = sand.u32 %s72, 1
          %s270 = smul.addr %s269, 32
          %s271 = scalar_lea.vmem [#allocation2], %s270
          %273 = dma.done %s268, 512
        $region40: #{sincos_embed.1} parent=35 // pred_fallthru
          _
      $region36: #{sincos_embed.1} parent=5 // pred_fallthru
        _
    $region6: #{sincos_embed.1} parent=1 // loop_footer
      %s15 = sadd.s32 1, %s11
    $region7: #{sincos_embed.1} parent=1 // loop_footer_branch
      %10 = sbr.rel target = $region3
    $region8: #{sincos_embed.1} parent=1 // loop_exit
      _
    %274 = vsyncpa [#allocation3], 1
    %s275 = scalar_lea.sflag [#allocation3], 1
    %276 = vsyncpa %s275, 1

</llo_original>
